<compile_context>
chip_gen: v7x
topology: tpu7x:2x2x1
jax: 0.10.0
libtpu: 0.0.40
codegen_flags: <defaults>
</compile_context>

<pallas_src>
import functools
import math

import jax
import jax.numpy as jnp
from jax.experimental import pallas as pl
from jax.experimental.pallas import tpu as pltpu


def _round_up(n, m):
    return ((n + m - 1) // m) * m


def _vmem_capacity_bytes():
    """Best-effort VMEM capacity query; conservative 64 MiB fallback."""
    try:
        info = pltpu.get_tpu_info()
        return int(getattr(info, "vmem_capacity_bytes", 64 * 1024 * 1024))
    except Exception:
        return 64 * 1024 * 1024


def _time2vec_kernel(x_ref, p_ref, v0_ref, v1_ref, *, d, c):
    # x_ref : (TR, C) VMEM, lane-interleaved: column d*m + k holds feature k of
    #         batch element m of that row.  Full 8-sublane / 128-lane vregs.
    # p_ref : (P_ROWS, C) VMEM resident parameter table:
    #         rows 0..2d-2 : masked shifted-weight vectors (shift s = row - (d-1))
    #         row  2d-1    : b   tiled with period d
    #         row  2d      : w0  tiled with period d
    #         row  2d+1    : b0  broadcast
    # v0/v1 : (TR, C) VMEM outputs in the same lane-interleaved layout.
    i_b = 2 * d - 1
    i_w0 = 2 * d
    i_b0 = 2 * d + 1

    x = x_ref[...]

    # Linear part: v0 = w0 * x + b0  (pure VPU, full-tile unmasked store).
    v0_ref[...] = p_ref[i_w0:i_w0 + 1, :] * x + p_ref[i_b0:i_b0 + 1, :]

    # Periodic part: v1 = sin(x @ w + b).  The DxD contraction is expressed as
    # (2d-1) masked lane-rolls + broadcast-FMAs; masked weights guarantee that
    # wrapped-around lanes (other batch elements) contribute zero.
    acc = None
    for i, s in enumerate(range(-(d - 1), d)):
        xs = x if s == 0 else pltpu.roll(x, shift=s % c, axis=1)
        term = p_ref[i:i + 1, :] * xs
        acc = term if acc is None else acc + term
    acc = acc + p_ref[i_b:i_b + 1, :]
    v1_ref[...] = jnp.sin(acc)


def time2vec(x, w0, w, b, b0):
    """Pallas-TPU Time2Vec forward.  Returns cat([w0*x+b0, sin(x@w+b)], -1)."""
    orig_shape = x.shape
    d = orig_shape[-1]

    x2 = jnp.asarray(x, jnp.float32).reshape(-1, d)
    n = x2.shape[0]

    # Lane-interleaved view: (N, d) -> (rows, c) is a free row-major reshape.
    c = (128 * d) // math.gcd(128, d)          # multiple of 128 lanes and of d
    elems_per_row = c // d

    # Tile / grid selection (generation aware).
    big_vmem = _vmem_capacity_bytes() >= 128 * 1024 * 1024
    target_rows = max(8, (262144 if big_vmem else 131072) // elems_per_row)

    rows_needed = max(1, pl.cdiv(n, elems_per_row))
    n_steps = max(1, pl.cdiv(rows_needed, target_rows))
    if (not big_vmem) and n_steps < 2 and rows_needed >= 1024:
        n_steps = 2                            # keep both v7x TensorCores busy
    tr = _round_up(pl.cdiv(rows_needed, n_steps), 8)
    rows_pad = tr * n_steps
    n_pad = rows_pad * elems_per_row

    if n_pad != n:                             # no-op (elided) when N is aligned
        x2 = jnp.pad(x2, ((0, n_pad - n), (0, 0)))
    xi = x2.reshape(rows_pad, c)               # free reshape, no transpose

    # ---- Resident parameter table (tiny; built once in the wrapper) ----
    w_f = jnp.asarray(w, jnp.float32).reshape(d, d)
    b_f = jnp.asarray(b, jnp.float32).reshape(d)
    w0_f = jnp.asarray(w0, jnp.float32).reshape(d)
    b0_f = jnp.asarray(b0, jnp.float32).reshape(())

    jj = jnp.arange(d)
    prow = []
    for s in range(-(d - 1), d):
        kk = jj - s
        valid = (kk >= 0) & (kk < d)
        w_s = jnp.where(valid, w_f[jnp.clip(kk, 0, d - 1), jj], 0.0)   # (d,)
        prow.append(jnp.tile(w_s, elems_per_row))
    prow.append(jnp.tile(b_f, elems_per_row))
    prow.append(jnp.tile(w0_f, elems_per_row))
    prow.append(jnp.full((c,), b0_f, jnp.float32))
    params = jnp.stack(prow)                                           # (2d+2, c)
    p_rows = _round_up(params.shape[0], 8)
    params = jnp.pad(params, ((0, p_rows - params.shape[0]), (0, 0)))

    grid = (rows_pad // tr,)
    kernel = functools.partial(_time2vec_kernel, d=d, c=c)

    cost = pl.CostEstimate(
        flops=int(n) * (2 * d * (2 * d - 1) + 2 * d),
        transcendentals=int(n) * d,
        bytes_accessed=int(n) * d * 4 * 3,
    )

    v0i, v1i = pl.pallas_call(
        kernel,
        out_shape=(
            jax.ShapeDtypeStruct((rows_pad, c), jnp.float32),
            jax.ShapeDtypeStruct((rows_pad, c), jnp.float32),
        ),
        grid=grid,
        in_specs=[
            pl.BlockSpec((tr, c), lambda i: (i, 0)),        # x (lane-dense)
            pl.BlockSpec((p_rows, c), lambda i: (0, 0)),    # params (resident)
        ],
        out_specs=[
            pl.BlockSpec((tr, c), lambda i: (i, 0)),        # v0
            pl.BlockSpec((tr, c), lambda i: (i, 0)),        # v1
        ],
        compiler_params=pltpu.CompilerParams(
            dimension_semantics=("parallel",),
            vmem_limit_bytes=(64 if big_vmem else 32) * 1024 * 1024,
        ),
        cost_estimate=cost,
    )(xi, params)

    # Free reshapes back to (N, d); only this concat is left in XLA.
    # TODO(synk): if callers can consume (v0, v1) slabs directly, drop the concat.
    v0 = v0i.reshape(n_pad, d)[:n]
    v1 = v1i.reshape(n_pad, d)[:n]
    out = jnp.concatenate([v0, v1], axis=-1)
    return out.reshape(*orig_shape[:-1], 2 * d)


def time2vec_ref(x, w0, w, b, b0):
    v1 = jnp.sin(jnp.matmul(x, w) + b)
    v0 = w0 * x + b0
    return jnp.concatenate([v0, v1], axis=-1)


if __name__ == "__main__":
    input_dim = 4
    batch, seq = 2, 8

    key = jax.random.PRNGKey(0)
    k_x, k_w0, k_w, k_b, k_b0 = jax.random.split(key, 5)

    x = jax.random.normal(k_x, (batch, seq, input_dim), dtype=jnp.float32)
    w0 = jax.random.normal(k_w0, (1, input_dim), dtype=jnp.float32)
    w = jax.random.normal(k_w, (input_dim, input_dim), dtype=jnp.float32)
    b = jax.random.normal(k_b, (1, input_dim), dtype=jnp.float32)
    b0 = jax.random.normal(k_b0, (1,), dtype=jnp.float32)

    out = jax.block_until_ready(time2vec(x, w0, w, b, b0))

    ref = time2vec_ref(x, w0, w, b, b0)
    assert out.shape == (batch, seq, 2 * input_dim), out.shape
    assert jnp.allclose(out, ref, atol=1e-5, rtol=1e-5), "mismatch vs reference"

    print("KERNEL_OK")
</pallas_src>

<mosaic_0001>
module attributes {stable_mosaic.version = 11 : i64} {
  func.func @_time2vec_kernel(%arg0: i32, %arg1: memref<8x128xf32, #tpu.memory_space<vmem>>, %arg2: memref<16x128xf32, #tpu.memory_space<vmem>>, %arg3: memref<8x128xf32, #tpu.memory_space<vmem>>, %arg4: memref<8x128xf32, #tpu.memory_space<vmem>>) attributes {dimension_semantics = [#tpu.dimension_semantics<parallel>], iteration_bounds = array<i64: 1>, scalar_prefetch = 0 : i64, scratch_operands = 0 : i64, tpu.core_type = #tpu.core_type<tc>, window_params = [{transform_indices = @transform_0, window_bounds = array<i64: 8, 128>}, {pipeline_mode = #tpu.pipeline_mode<synchronous>, transform_indices = @transform_1, window_bounds = array<i64: 16, 128>}, {transform_indices = @transform_2, window_bounds = array<i64: 8, 128>}, {transform_indices = @transform_3, window_bounds = array<i64: 8, 128>}]} {
    %c0 = arith.constant 0 : index
    %c0_0 = arith.constant 0 : index
    %0 = vector.load %arg1[%c0, %c0_0] : memref<8x128xf32, #tpu.memory_space<vmem>>, vector<8x128xf32>
    %c8 = arith.constant 8 : index
    %c0_1 = arith.constant 0 : index
    %1 = vector.load %arg2[%c8, %c0_1] : memref<16x128xf32, #tpu.memory_space<vmem>>, vector<1x128xf32>
    %2 = vector.broadcast %1 : vector<1x128xf32> to vector<8x128xf32>
    %3 = arith.mulf %2, %0 : vector<8x128xf32>
    %c9 = arith.constant 9 : index
    %c0_2 = arith.constant 0 : index
    %4 = vector.load %arg2[%c9, %c0_2] : memref<16x128xf32, #tpu.memory_space<vmem>>, vector<1x128xf32>
    %5 = vector.broadcast %4 : vector<1x128xf32> to vector<8x128xf32>
    %6 = arith.addf %3, %5 : vector<8x128xf32>
    %c0_3 = arith.constant 0 : index
    %c0_4 = arith.constant 0 : index
    %7 = vector.load %arg3[%c0_3, %c0_4] : memref<8x128xf32, #tpu.memory_space<vmem>>, vector<8x128xf32>
    tpu.vector_store %arg3[%c0_3, %c0_4], %6 {strides = array<i32>} : memref<8x128xf32, #tpu.memory_space<vmem>>, vector<8x128xf32>,
    %c125_i32 = arith.constant 125 : i32
    %8 = tpu.dynamic_rotate %0 by %c125_i32 dim 1 : vector<8x128xf32>, i32 -> vector<8x128xf32>
    %c0_5 = arith.constant 0 : index
    %c0_6 = arith.constant 0 : index
    %9 = vector.load %arg2[%c0_5, %c0_6] : memref<16x128xf32, #tpu.memory_space<vmem>>, vector<1x128xf32>
    %10 = vector.broadcast %9 : vector<1x128xf32> to vector<8x128xf32>
    %11 = arith.mulf %10, %8 : vector<8x128xf32>
    %c126_i32 = arith.constant 126 : i32
    %12 = tpu.dynamic_rotate %0 by %c126_i32 dim 1 : vector<8x128xf32>, i32 -> vector<8x128xf32>
    %c1 = arith.constant 1 : index
    %c0_7 = arith.constant 0 : index
    %13 = vector.load %arg2[%c1, %c0_7] : memref<16x128xf32, #tpu.memory_space<vmem>>, vector<1x128xf32>
    %14 = vector.broadcast %13 : vector<1x128xf32> to vector<8x128xf32>
    %15 = arith.mulf %14, %12 : vector<8x128xf32>
    %16 = arith.addf %11, %15 : vector<8x128xf32>
    %c127_i32 = arith.constant 127 : i32
    %17 = tpu.dynamic_rotate %0 by %c127_i32 dim 1 : vector<8x128xf32>, i32 -> vector<8x128xf32>
    %c2 = arith.constant 2 : index
    %c0_8 = arith.constant 0 : index
    %18 = vector.load %arg2[%c2, %c0_8] : memref<16x128xf32, #tpu.memory_space<vmem>>, vector<1x128xf32>
    %19 = vector.broadcast %18 : vector<1x128xf32> to vector<8x128xf32>
    %20 = arith.mulf %19, %17 : vector<8x128xf32>
    %21 = arith.addf %16, %20 : vector<8x128xf32>
    %c3 = arith.constant 3 : index
    %c0_9 = arith.constant 0 : index
    %22 = vector.load %arg2[%c3, %c0_9] : memref<16x128xf32, #tpu.memory_space<vmem>>, vector<1x128xf32>
    %23 = vector.broadcast %22 : vector<1x128xf32> to vector<8x128xf32>
    %24 = arith.mulf %23, %0 : vector<8x128xf32>
    %25 = arith.addf %21, %24 : vector<8x128xf32>
    %c1_i32 = arith.constant 1 : i32
    %26 = tpu.dynamic_rotate %0 by %c1_i32 dim 1 : vector<8x128xf32>, i32 -> vector<8x128xf32>
    %c4 = arith.constant 4 : index
    %c0_10 = arith.constant 0 : index
    %27 = vector.load %arg2[%c4, %c0_10] : memref<16x128xf32, #tpu.memory_space<vmem>>, vector<1x128xf32>
    %28 = vector.broadcast %27 : vector<1x128xf32> to vector<8x128xf32>
    %29 = arith.mulf %28, %26 : vector<8x128xf32>
    %30 = arith.addf %25, %29 : vector<8x128xf32>
    %c2_i32 = arith.constant 2 : i32
    %31 = tpu.dynamic_rotate %0 by %c2_i32 dim 1 : vector<8x128xf32>, i32 -> vector<8x128xf32>
    %c5 = arith.constant 5 : index
    %c0_11 = arith.constant 0 : index
    %32 = vector.load %arg2[%c5, %c0_11] : memref<16x128xf32, #tpu.memory_space<vmem>>, vector<1x128xf32>
    %33 = vector.broadcast %32 : vector<1x128xf32> to vector<8x128xf32>
    %34 = arith.mulf %33, %31 : vector<8x128xf32>
    %35 = arith.addf %30, %34 : vector<8x128xf32>
    %c3_i32 = arith.constant 3 : i32
    %36 = tpu.dynamic_rotate %0 by %c3_i32 dim 1 : vector<8x128xf32>, i32 -> vector<8x128xf32>
    %c6 = arith.constant 6 : index
    %c0_12 = arith.constant 0 : index
    %37 = vector.load %arg2[%c6, %c0_12] : memref<16x128xf32, #tpu.memory_space<vmem>>, vector<1x128xf32>
    %38 = vector.broadcast %37 : vector<1x128xf32> to vector<8x128xf32>
    %39 = arith.mulf %38, %36 : vector<8x128xf32>
    %40 = arith.addf %35, %39 : vector<8x128xf32>
    %c7 = arith.constant 7 : index
    %c0_13 = arith.constant 0 : index
    %41 = vector.load %arg2[%c7, %c0_13] : memref<16x128xf32, #tpu.memory_space<vmem>>, vector<1x128xf32>
    %42 = vector.broadcast %41 : vector<1x128xf32> to vector<8x128xf32>
    %43 = arith.addf %40, %42 : vector<8x128xf32>
    %44 = math.sin %43 : vector<8x128xf32>
    %c0_14 = arith.constant 0 : index
    %c0_15 = arith.constant 0 : index
    %45 = vector.load %arg4[%c0_14, %c0_15] : memref<8x128xf32, #tpu.memory_space<vmem>>, vector<8x128xf32>
    tpu.vector_store %arg4[%c0_14, %c0_15], %44 {strides = array<i32>} : memref<8x128xf32, #tpu.memory_space<vmem>>, vector<8x128xf32>,
    return
  }
  func.func @transform_0(%arg0: i32) -> (i32, i32) {
    %c0_i32 = arith.constant 0 : i32
    %c0_i32_0 = arith.constant 0 : i32
    return %arg0, %c0_i32 : i32, i32
  }
  func.func @transform_1(%arg0: i32) -> (i32, i32) {
    %c0_i32 = arith.constant 0 : i32
    %c0_i32_0 = arith.constant 0 : i32
    %c0_i32_1 = arith.constant 0 : i32
    return %c0_i32, %c0_i32_0 : i32, i32
  }
  func.func @transform_2(%arg0: i32) -> (i32, i32) {
    %c0_i32 = arith.constant 0 : i32
    %c0_i32_0 = arith.constant 0 : i32
    return %arg0, %c0_i32 : i32, i32
  }
  func.func @transform_3(%arg0: i32) -> (i32, i32) {
    %c0_i32 = arith.constant 0 : i32
    %c0_i32_0 = arith.constant 0 : i32
    return %arg0, %c0_i32 : i32, i32
  }
}

</mosaic_0001>

<llo_original>
// kernel: tpu_custom_call.1
$region0: #{tpu_custom_call.1}
  #allocation0 [shape = 'u32[]', space=smem, size = 0x4, offset = 0x4, fixed_abs, tag = 'smem constant byte address 0x4 - core index']
  #allocation1 [shape = 'u32[144,128]{1,0:T(1,128)}', space=vmem, size = 0x12000, scoped, tag = 'internal scratch']
  %s0 = inlined_call_operand.hbm [shape: f32[8,128], index: 0, kind: input, shape index: {}]
  %s1 = inlined_call_operand.hbm [shape: f32[16,128], index: 1, kind: input, shape index: {}]
  %s2 = inlined_call_operand.hbm [shape: f32[8,128], index: 2, kind: output, shape index: {0}]
  %s3 = inlined_call_operand.hbm [shape: f32[8,128], index: 3, kind: output, shape index: {1}]
  %4 = xla_tuple %s2, %s3
  %s5 = sld [smem:[#allocation0]]
  $region34: #{tpu_custom_call.1} parent=0
    _
  %s7 = ssub.s32 1, %s5
  %s8 = scalar_select 0, %s7, %s5
  $region1: #{tpu_custom_call.1} parent=0
    #allocation2 [shape = 'u8[4096]{0}', space=vmem, size = 0x1000, scoped, tag = 'input window, operand 0, single buffered']
    #allocation3 [shape = 's32[1]{0}', space=sflag, size = 0x4, scoped, tag = 'scoped memory for tpu_custom_call.1']
    #allocation4 [shape = 's32[1]{0}', space=sflag, size = 0x4, scoped, tag = 'scoped memory for tpu_custom_call.1']
    #allocation5 [shape = 'u8[8192]{0}', space=vmem, size = 0x2000, scoped, tag = 'input window, operand 1, single buffered']
    #allocation6 [shape = 's32[1]{0}', space=sflag, size = 0x4, scoped, tag = 'scoped memory for tpu_custom_call.1']
    #allocation7 [shape = 'u8[4096]{0}', space=vmem, size = 0x1000, scoped, tag = 'output window, operand 0, single buffered']
    #allocation8 [shape = 'u8[4096]{0}', space=vmem, size = 0x1000, scoped, tag = 'output window, operand 1, single buffered']
    #allocation9 [shape = 's32[1]{0}', space=sflag, size = 0x4, scoped, tag = 'scoped memory for tpu_custom_call.1']
    %9 = vsyncpa [#allocation3], 0
    %10 = vsyncpa [#allocation6], 0
    %11 = vsyncpa [#allocation4], 0
    %12 = vsyncpa [#allocation9], 0
    // Predicated region
    $region2: #{tpu_custom_call.1} parent=1 // pred_check
      _
    $region3: #{tpu_custom_call.1} parent=1 // pred_check_branch
      %14 = sbr.rel (0) target = $region5
    $region4: #{tpu_custom_call.1} parent=1 // pred_region
      %s16 = ssub.s32 128, 128
      %17 = vsyncadd [#allocation3], %s16
      %s19 = sshll.u32 [#allocation2], 4
      %s20 = int_to_ptr.vmem [resolvable:$true] %s19
      %22 = dma.hbm_to_vmem [thread:$0]  %s0, 128, %s20, [#allocation3]
    $region5: #{tpu_custom_call.1} parent=1 // pred_fallthru
      _
    // Predicated region
    $region6: #{tpu_custom_call.1} parent=1 // pred_check
      _
    $region7: #{tpu_custom_call.1} parent=1 // pred_check_branch
      %24 = sbr.rel (0) target = $region9
    $region8: #{tpu_custom_call.1} parent=1 // pred_region
      %s26 = ssub.s32 256, 256
      %27 = vsyncadd [#allocation6], %s26
      %s28 = sshll.u32 [#allocation5], 4
      %s29 = int_to_ptr.vmem [resolvable:$true] %s28
      %34 = dma.hbm_to_vmem [thread:$0]  %s1, 256, %s29, [#allocation6], 128, 128, 8
    $region9: #{tpu_custom_call.1} parent=1 // pred_fallthru
      _
    // Predicated region
    $region10: #{tpu_custom_call.1} parent=1 // pred_check
      _
    $region11: #{tpu_custom_call.1} parent=1 // pred_check_branch
      %36 = sbr.rel (0) target = $region13
    $region12: #{tpu_custom_call.1} parent=1 // pred_region
      %37 = dma.done [#allocation3], 128
    $region13: #{tpu_custom_call.1} parent=1 // pred_fallthru
      _
    // Predicated region
    $region14: #{tpu_custom_call.1} parent=1 // pred_check
      _
    $region15: #{tpu_custom_call.1} parent=1 // pred_check_branch
      %39 = sbr.rel (0) target = $region17
    $region16: #{tpu_custom_call.1} parent=1 // pred_region
      %40 = dma.done [#allocation6], 256
    $region17: #{tpu_custom_call.1} parent=1 // pred_fallthru
      _
    %v41 = vld [vmem:[#allocation2] sm:$0xff]
    %v42 = vld [vmem:[#allocation5 + $0x8] sm:$0x1]
    %v43 = vlaneseq
    %v44 = vshrl.u32 %v43, 7
    %v45 = vsub.s32 0, %v44
    %v46 = vrot.slane %v42, %v45
    %v47 = vmul.f32 %v46, %v41
    %v48 = vld [vmem:[#allocation5 + $0x9] sm:$0x1]
    %v49 = vlaneseq
    %v50 = vshrl.u32 %v49, 7
    %v51 = vsub.s32 0, %v50
    %v52 = vrot.slane %v48, %v51
    %v53 = vadd.f32 %v47, %v52
    %54 = vst [vmem:[#allocation7] sm:$0xff] %v53
    %55 = vrot.lane.b32.xlu0 %v41, 125
    %v56 = vpop.permute.xlu0 %55
    %v57 = vld [vmem:[#allocation5] sm:$0x1]
    %v58 = vlaneseq
    %v59 = vshrl.u32 %v58, 7
    %v60 = vsub.s32 0, %v59
    %v61 = vrot.slane %v57, %v60
    %v62 = vmul.f32 %v61, %v56
    %63 = vrot.lane.b32.xlu0 %v41, 126
    %v64 = vpop.permute.xlu0 %63
    %v65 = vld [vmem:[#allocation5 + $0x1] sm:$0x1]
    %v66 = vlaneseq
    %v67 = vshrl.u32 %v66, 7
    %v68 = vsub.s32 0, %v67
    %v69 = vrot.slane %v65, %v68
    %v70 = vmul.f32 %v69, %v64
    %v71 = vadd.f32 %v62, %v70
    %72 = vrot.lane.b32.xlu0 %v41, 127
    %v73 = vpop.permute.xlu0 %72
    %v74 = vld [vmem:[#allocation5 + $0x2] sm:$0x1]
    %v75 = vlaneseq
    %v76 = vshrl.u32 %v75, 7
    %v77 = vsub.s32 0, %v76
    %v78 = vrot.slane %v74, %v77
    %v79 = vmul.f32 %v78, %v73
    %v80 = vadd.f32 %v71, %v79
    %v81 = vld [vmem:[#allocation5 + $0x3] sm:$0x1]
    %v82 = vlaneseq
    %v83 = vshrl.u32 %v82, 7
    %v84 = vsub.s32 0, %v83
    %v85 = vrot.slane %v81, %v84
    %v86 = vmul.f32 %v85, %v41
    %v87 = vadd.f32 %v80, %v86
    %88 = vrot.lane.b32.xlu0 %v41, 1
    %v89 = vpop.permute.xlu0 %88
    %v90 = vld [vmem:[#allocation5 + $0x4] sm:$0x1]
    %v91 = vlaneseq
    %v92 = vshrl.u32 %v91, 7
    %v93 = vsub.s32 0, %v92
    %v94 = vrot.slane %v90, %v93
    %v95 = vmul.f32 %v94, %v89
    %v96 = vadd.f32 %v87, %v95
    %97 = vrot.lane.b32.xlu0 %v41, 2
    %v98 = vpop.permute.xlu0 %97
    %v99 = vld [vmem:[#allocation5 + $0x5] sm:$0x1]
    %v100 = vlaneseq
    %v101 = vshrl.u32 %v100, 7
    %v102 = vsub.s32 0, %v101
    %v103 = vrot.slane %v99, %v102
    %v104 = vmul.f32 %v103, %v98
    %v105 = vadd.f32 %v96, %v104
    %106 = vrot.lane.b32.xlu0 %v41, 3
    %v107 = vpop.permute.xlu0 %106
    %v108 = vld [vmem:[#allocation5 + $0x6] sm:$0x1]
    %v109 = vlaneseq
    %v110 = vshrl.u32 %v109, 7
    %v111 = vsub.s32 0, %v110
    %v112 = vrot.slane %v108, %v111
    %v113 = vmul.f32 %v112, %v107
    %v114 = vadd.f32 %v105, %v113
    %v115 = vld [vmem:[#allocation5 + $0x7] sm:$0x1]
    %v116 = vlaneseq
    %v117 = vshrl.u32 %v116, 7
    %v118 = vsub.s32 0, %v117
    %v119 = vrot.slane %v115, %v118
    %v120 = vadd.f32 %v114, %v119
    %v121 = vand.u32 2147483647, %v120
    %vm122 = vcmp.le.f32.partialorder %v121, 0.7853982
    %vm123 = vcmp.lt.s32.totalorder %v120, 0
    %v124 = vand.u32 %v120, 2139095040
    %v125 = vshrl.u32 %v124, 23
    %v126 = vsub.s32 %v125, 127
    %v127 = vand.u32 2147483647, %v120
    %v128 = vand.u32 %v127, 8388607
    %v129 = vor.u32 %v128, 8388608
    %v130 = vsub.s32 0, %v129
    %v131 = vadd.s32 %v126, 1
    %vm132 = vcmp.gt.s32.totalorder %v131, 0
    %v133 = vsel %vm132, %v131, 0
    %v134 = vshrl.u32 %v133, 5
    %v135 = vand.u32 %v133, 31
    %v136 = vsub.s32 32, %v135
    %v137 = vshrl.u32 683565275, %v136
    %v138 = vshll.u32 683565275, %v135
    %v139 = vshrl.u32 2475754826, %v136
    %v140 = vor.u32 %v138, %v139
    %v141 = vshll.u32 2475754826, %v135
    %v142 = vshrl.u32 2131351028, %v136
    %v143 = vor.u32 %v141, %v142
    %v144 = vshll.u32 2131351028, %v135
    %v145 = vshrl.u32 2102212464, %v136
    %v146 = vor.u32 %v144, %v145
    %v147 = vshll.u32 2102212464, %v135
    %v148 = vshrl.u32 920167782, %v136
    %v149 = vor.u32 %v147, %v148
    %v150 = vshll.u32 920167782, %v135
    %v151 = vshrl.u32 1326507024, %v136
    %v152 = vor.u32 %v150, %v151
    %vm153 = vcmp.lt.s32.totalorder %v134, 1
    %vm154 = vcmp.lt.s32.totalorder %v134, 2
    %vm155 = vcmp.lt.s32.totalorder %v134, 3
    %vm156 = vcmp.lt.s32.totalorder %v134, 4
    %v157 = vsel %vm153, %v137, %v140
    %v158 = vsel %vm156, %v146, 2102212464
    %v159 = vsel %vm155, %v143, %v158
    %v160 = vsel %vm154, %v157, %v159
    %v161 = vsel %vm153, %v140, %v143
    %v162 = vsel %vm156, %v149, 920167782
    %v163 = vsel %vm155, %v146, %v162
    %v164 = vsel %vm154, %v161, %v163
    %v165 = vsel %vm153, %v143, %v146
    %v166 = vsel %vm156, %v152, 1326507024
    %v167 = vsel %vm155, %v149, %v166
    %v168 = vsel %vm154, %v165, %v167
    %v169 = vshll.u32 %v129, 8
    %v170 = vmul.u32.u64.compose %v169, %v168
    %v171 = vextract.low.u32 %v170
    %v172 = vextract.high.u32 %v170
    %v173 = vmul.u32.u64.compose %v169, %v164
    %v174 = vextract.low.u32 %v173
    %v175 = vextract.high.u32 %v173
    %v176 = vmul.u32 %v169, %v160
    %v177 = vadd.s32 %v172, %v174
    %vm178 = vc.u32 %v172, %v174
    %v179 = vadd.s32 %v175, 1
    %v180 = vsel %vm178, %v179, %v175
    %v181 = vadd.s32 %v176, %v180
    %v182 = vadd.s32 %v181, 536870912
    %v183 = vshrl.u32 %v182, 30
    %v184 = vshll.u32 %v183, 30
    %v185 = vsub.s32 %v181, %v184
    %vm186 = vcmp.lt.s32.totalorder %v185, 0
    %v187 = vsub.s32 0, %v185
    %v188 = vsel %vm186, %v187, %v185
    %v189 = vclz %v188
    %v190 = vsub.s32 %v189, 2
    %vm191 = vcmp.gt.s32.totalorder 0, %v190
    %v192 = vsel %vm191, 0, %v190
    %v193 = vsub.s32 32, %v192
    %v194 = vshll.u32 %v185, %v192
    %v195 = vshrl.u32 %v177, %v193
    %v196 = vor.u32 %v194, %v195
    %v197 = vsub.s32 4294967266, %v192
    %v198 = vadd.s32 %v197, 127
    %v199 = vshll.u32 %v198, 23
    %v200 = vor.u32 4788187, %v199
    %v201 = vand.u32 2147483647, %v200
    %v203 = vcvt.s32.f32 %v196
    %v204 = vmul.f32 %v203, %v201
    %v205 = vxor.u32 %v204, 2147483648
    %v206 = vsel %vm123, %v205, %v204
    %v207 = vsub.s32 4, %v183
    %v208 = vsel %vm123, %v207, %v183
    %v209 = vsel %vm122, %v120, %v206
    %v210 = vsel %vm122, 0, %v208
    %v211 = vcosq.f32.pop %v209
    %v212 = vsinq.f32.pop %v209
    %vm213 = vweird.f32 %v120
    %v214 = vadd.s32 %v210, 3
    %v215 = vand.u32 %v214, 3
    %vm216 = vcmp.lt.s32.totalorder %v215, 2
    %vm217 = vcmp.eq.s32.totalorder %v215, 0
    %v218 = vxor.u32 %v212, 2147483648
    %v219 = vsel %vm217, %v211, %v218
    %vm220 = vcmp.eq.s32.totalorder %v215, 2
    %v221 = vxor.u32 %v211, 2147483648
    %v222 = vsel %vm220, %v221, %v212
    %v223 = vsel %vm216, %v219, %v222
    %v224 = vsel %vm213, nan, %v223
    %225 = vst [vmem:[#allocation8] sm:$0xff] %v224
    // Predicated region
    $region18: #{tpu_custom_call.1} parent=1 // pred_check
      _
    $region19: #{tpu_custom_call.1} parent=1 // pred_check_branch
      %227 = sbr.rel (0) target = $region21
    $region20: #{tpu_custom_call.1} parent=1 // pred_region
      %s229 = ssub.s32 128, 128
      %230 = vsyncadd [#allocation4], %s229
      %s232 = sshll.u32 [#allocation7], 4
      %s233 = int_to_ptr.vmem [resolvable:$true] %s232
      %235 = dma.vmem_to_hbm [thread:$0]  %s233, 128, %s2, [#allocation4]
    $region21: #{tpu_custom_call.1} parent=1 // pred_fallthru
      _
    // Predicated region
    $region22: #{tpu_custom_call.1} parent=1 // pred_check
      _
    $region23: #{tpu_custom_call.1} parent=1 // pred_check_branch
      %237 = sbr.rel (0) target = $region25
    $region24: #{tpu_custom_call.1} parent=1 // pred_region
      %s239 = ssub.s32 128, 128
      %240 = vsyncadd [#allocation9], %s239
      %s242 = sshll.u32 [#allocation8], 4
      %s243 = int_to_ptr.vmem [resolvable:$true] %s242
      %245 = dma.vmem_to_hbm [thread:$0]  %s243, 128, %s3, [#allocation9]
    $region25: #{tpu_custom_call.1} parent=1 // pred_fallthru
      _
    // Predicated region
    $region26: #{tpu_custom_call.1} parent=1 // pred_check
      _
    $region27: #{tpu_custom_call.1} parent=1 // pred_check_branch
      %247 = sbr.rel (0) target = $region29
    $region28: #{tpu_custom_call.1} parent=1 // pred_region
      %248 = dma.done [#allocation4], 128
    $region29: #{tpu_custom_call.1} parent=1 // pred_fallthru
      _
    // Predicated region
    $region30: #{tpu_custom_call.1} parent=1 // pred_check
      _
    $region31: #{tpu_custom_call.1} parent=1 // pred_check_branch
      %250 = sbr.rel (0) target = $region33
    $region32: #{tpu_custom_call.1} parent=1 // pred_region
      %251 = dma.done [#allocation9], 128
    $region33: #{tpu_custom_call.1} parent=1 // pred_fallthru
      _
    %252 = vsyncpa [#allocation3], 1
    %253 = vsyncpa [#allocation6], 1
    %254 = vsyncpa [#allocation4], 1
    %255 = vsyncpa [#allocation9], 1

</llo_original>
